<compile_context>
chip_gen: v7x
topology: tpu7x:2x2x1
jax: 0.10.0
libtpu: 0.0.40
codegen_flags: <defaults>
</compile_context>

<pallas_src>
import functools

import numpy as np
import jax
import jax.numpy as jnp
from jax import lax
from jax.experimental import pallas as pl
from jax.experimental.pallas import tpu as pltpu

EPS = 1e-5
LANES = 128


def _round_up(x, m):
    return (x + m - 1) // m * m


# ---------------------------------------------------------------------------
# Pallas kernels
# ---------------------------------------------------------------------------
def conv_stats_kernel(p_ref, w_ref, y_ref, stat_ref):
    """Per-tile conv-as-matmul + global BN statistics accumulation.

    p_ref: (TM, K) patches, w_ref: (K, Cp) packed weights,
    y_ref: (TM, Cp) f32 pre-BN conv output (written back per tile),
    stat_ref: (2, Cp) f32 accumulator [sum(y); sum(y*y)] resident across the
    whole (arbitrary) M grid axis.
    """
    y = jnp.dot(p_ref[...], w_ref[...], preferred_element_type=jnp.float32)
    y_ref[...] = y

    @pl.when(pl.program_id(0) == 0)
    def _():
        stat_ref[...] = jnp.zeros_like(stat_ref)

    # Single-pass sums (mean/var derived later); cross-sublane reduce -> XLU.
    stat_ref[...] += jnp.concatenate(
        [jnp.sum(y, axis=0, keepdims=True),
         jnp.sum(y * y, axis=0, keepdims=True)], axis=0)


def bn_relu_kernel(y_ref, stat_ref, g_ref, b_ref, o_ref, *, inv_m):
    """o = relu((y - mean) * rsqrt(var + eps) * g + b), stats are global."""
    stats = stat_ref[...]
    mean = stats[0:1, :] * inv_m
    var = jnp.maximum(stats[1:2, :] * inv_m - mean * mean, 0.0)
    yhat = (y_ref[...] - mean) * lax.rsqrt(var + EPS)
    o_ref[...] = jnp.maximum(yhat * g_ref[...] + b_ref[...], 0.0).astype(o_ref.dtype)


def bn_relu_skip_kernel(y_ref, x_ref, stat_ref, g_ref, b_ref,
                        wid_ref, bid_ref, o_ref, *, inv_m):
    """o = relu(bn(y)) + (x @ wid + bid); the 1x1-conv skip is fused here."""
    stats = stat_ref[...]
    mean = stats[0:1, :] * inv_m
    var = jnp.maximum(stats[1:2, :] * inv_m - mean * mean, 0.0)
    yhat = (y_ref[...] - mean) * lax.rsqrt(var + EPS)
    main = jnp.maximum(yhat * g_ref[...] + b_ref[...], 0.0)
    resid = jnp.dot(x_ref[...], wid_ref[...],
                    preferred_element_type=jnp.float32) + bid_ref[...]
    o_ref[...] = (main + resid).astype(o_ref.dtype)


# ---------------------------------------------------------------------------
# pallas_call wrappers
# ---------------------------------------------------------------------------
def _conv_stats(p, w, cp, tile_m):
    m_pad, k = p.shape
    grid = (m_pad // tile_m,)
    flops = 2 * m_pad * k * cp
    bytes_acc = int(p.size * p.dtype.itemsize + w.size * w.dtype.itemsize
                    + m_pad * cp * 4 + 2 * cp * 4)
    y, stats = pl.pallas_call(
        conv_stats_kernel,
        grid=grid,
        in_specs=[pl.BlockSpec((tile_m, k), lambda i: (i, 0)),
                  pl.BlockSpec((k, cp), lambda i: (0, 0))],
        out_specs=(pl.BlockSpec((tile_m, cp), lambda i: (i, 0)),
                   pl.BlockSpec((2, cp), lambda i: (0, 0))),
        out_shape=(jax.ShapeDtypeStruct((m_pad, cp), jnp.float32),
                   jax.ShapeDtypeStruct((2, cp), jnp.float32)),
        compiler_params=pltpu.CompilerParams(
            dimension_semantics=("arbitrary",)),   # stats accumulator across M
        cost_estimate=pl.CostEstimate(flops=int(flops), transcendentals=0,
                                      bytes_accessed=bytes_acc),
    )(p, w)
    return y, stats


def _bn_relu(y, stats, g, b, m_valid, tile_m, out_dtype):
    m_pad, cp = y.shape
    grid = (m_pad // tile_m,)
    kern = functools.partial(bn_relu_kernel, inv_m=1.0 / float(m_valid))
    return pl.pallas_call(
        kern,
        grid=grid,
        in_specs=[pl.BlockSpec((tile_m, cp), lambda i: (i, 0)),
                  pl.BlockSpec((2, cp), lambda i: (0, 0)),
                  pl.BlockSpec((1, cp), lambda i: (0, 0)),
                  pl.BlockSpec((1, cp), lambda i: (0, 0))],
        out_specs=pl.BlockSpec((tile_m, cp), lambda i: (i, 0)),
        out_shape=jax.ShapeDtypeStruct((m_pad, cp), out_dtype),
        compiler_params=pltpu.CompilerParams(
            dimension_semantics=("parallel",)),
    )(y, stats, g, b)


def _bn_relu_skip(y, x_id, stats, g, b, wid, bid, m_valid, tile_m):
    m_pad, cp = y.shape
    cin = x_id.shape[1]
    grid = (m_pad // tile_m,)
    kern = functools.partial(bn_relu_skip_kernel, inv_m=1.0 / float(m_valid))
    flops = 2 * m_pad * cin * cp
    bytes_acc = int(y.size * 4 + x_id.size * x_id.dtype.itemsize + m_pad * cp * 4)
    return pl.pallas_call(
        kern,
        grid=grid,
        in_specs=[pl.BlockSpec((tile_m, cp), lambda i: (i, 0)),
                  pl.BlockSpec((tile_m, cin), lambda i: (i, 0)),
                  pl.BlockSpec((2, cp), lambda i: (0, 0)),
                  pl.BlockSpec((1, cp), lambda i: (0, 0)),
                  pl.BlockSpec((1, cp), lambda i: (0, 0)),
                  pl.BlockSpec((cin, cp), lambda i: (0, 0)),
                  pl.BlockSpec((1, cp), lambda i: (0, 0))],
        out_specs=pl.BlockSpec((tile_m, cp), lambda i: (i, 0)),
        out_shape=jax.ShapeDtypeStruct((m_pad, cp), jnp.float32),
        compiler_params=pltpu.CompilerParams(
            dimension_semantics=("parallel",)),
        cost_estimate=pl.CostEstimate(flops=int(flops), transcendentals=int(m_pad),
                                      bytes_accessed=bytes_acc),
    )(y, x_id, stats, g, b, wid, bid)


# ---------------------------------------------------------------------------
# Glue: im2col (pure data layout) + forward wrapper
# ---------------------------------------------------------------------------
def _im2col3x3(x, stride):
    """x: (N, H, W, C) -> (N*Ho*Wo, 9*C) with tap order (kh, kw, c)."""
    N, H, W, C = x.shape
    pad = 1
    Ho = (H + 2 * pad - 3) // stride + 1
    Wo = (W + 2 * pad - 3) // stride + 1
    xp = jnp.pad(x, ((0, 0), (pad, pad), (pad, pad), (0, 0)))
    cols = []
    for kh in range(3):
        for kw in range(3):
            cols.append(xp[:, kh:kh + stride * (Ho - 1) + 1:stride,
                              kw:kw + stride * (Wo - 1) + 1:stride, :])
    patches = jnp.concatenate(cols, axis=-1)                       # (N, Ho, Wo, 9*C)
    return patches.reshape(N * Ho * Wo, 9 * C), Ho, Wo


def resblock2d_forward(x_nchw, params, stride=1,
                       compute_dtype=jnp.bfloat16, tile_m=128):
    x = jnp.transpose(x_nchw, (0, 2, 3, 1)).astype(jnp.float32)    # NCHW -> NHWC
    N, H, W, Cin = x.shape
    Cout = params["w1"].shape[-1]
    Cp = _round_up(Cout, LANES)                                    # lane-dense channels
    cdt = compute_dtype

    # ---- pack / pad weights & per-channel params (hoisted, done once) ----
    def pad_cols(a):
        return jnp.pad(a, ((0, 0), (0, Cp - Cout))).astype(cdt)

    def pad_vec(v, fill):
        return jnp.pad(v, (0, Cp - Cout),
                       constant_values=fill).reshape(1, Cp).astype(jnp.float32)

    w1 = pad_cols(params["w1"].reshape(9 * Cin, Cout))
    w2 = pad_cols(params["w2"].reshape(9 * Cout, Cout))
    wid = pad_cols(params["wid"])
    g1, b1 = pad_vec(params["g1"], 1.0), pad_vec(params["b1"], 0.0)
    g2, b2 = pad_vec(params["g2"], 1.0), pad_vec(params["b2"], 0.0)
    bid = pad_vec(params["bid"], 0.0)

    # ---- stage 1: conv1 (3x3, stride) + global BN1 stats, then BN1+ReLU ----
    p1, Ho, Wo = _im2col3x3(x.astype(cdt), stride)
    M = N * Ho * Wo
    Mp = _round_up(M, tile_m)
    p1 = jnp.pad(p1, ((0, Mp - M), (0, 0)))          # zero rows: no effect on stats
    y1, s1 = _conv_stats(p1, w1, Cp, tile_m)
    z1 = _bn_relu(y1, s1, g1, b1, M, tile_m, cdt)    # (Mp, Cp) in compute dtype

    # ---- stage 2: conv2 (3x3, s=1) + BN2 stats, BN2+ReLU + fused 1x1 skip ----
    z1 = z1[:M, :Cout].reshape(N, Ho, Wo, Cout)
    p2, _, _ = _im2col3x3(z1, 1)
    p2 = jnp.pad(p2, ((0, Mp - M), (0, 0)))
    x_id = x[:, ::stride, ::stride, :].reshape(M, Cin).astype(cdt)  # 1x1 conv input
    x_id = jnp.pad(x_id, ((0, Mp - M), (0, 0)))
    y2, s2 = _conv_stats(p2, w2, Cp, tile_m)
    out = _bn_relu_skip(y2, x_id, s2, g2, b2, wid, bid, M, tile_m)

    out = out[:M, :Cout].reshape(N, Ho, Wo, Cout)
    return jnp.transpose(out, (0, 3, 1, 2))                         # NHWC -> NCHW


# ---------------------------------------------------------------------------
# Pure-JAX reference (independent conv via lax.conv_general_dilated)
# ---------------------------------------------------------------------------
def _bn_relu_ref(y, g, b):
    mean = y.mean(axis=(0, 1, 2))
    var = ((y - mean) ** 2).mean(axis=(0, 1, 2))
    return jnp.maximum((y - mean) * lax.rsqrt(var + EPS) * g + b, 0.0)


def resblock2d_reference(x_nchw, params, stride=1):
    x = jnp.transpose(x_nchw, (0, 2, 3, 1)).astype(jnp.float32)
    dn = ("NHWC", "HWIO", "NHWC")
    hi = lax.Precision.HIGHEST
    y = lax.conv_general_dilated(x, params["w1"], (stride, stride),
                                 ((1, 1), (1, 1)), dimension_numbers=dn, precision=hi)
    y = _bn_relu_ref(y, params["g1"], params["b1"])
    y = lax.conv_general_dilated(y, params["w2"], (1, 1),
                                 ((1, 1), (1, 1)), dimension_numbers=dn, precision=hi)
    y = _bn_relu_ref(y, params["g2"], params["b2"])
    r = lax.conv_general_dilated(x, params["wid"][None, None], (stride, stride),
                                 ((0, 0), (0, 0)), dimension_numbers=dn, precision=hi)
    r = r + params["bid"]
    return jnp.transpose(y + r, (0, 3, 1, 2))


# ---------------------------------------------------------------------------
# Main
# ---------------------------------------------------------------------------
if __name__ == "__main__":
    N, Cin, Cout, H, W = 2, 4, 8, 16, 16
    stride = 1

    key = jax.random.PRNGKey(0)
    kx, k1, k2, k3, k4, k5, k6, k7, k8 = jax.random.split(key, 9)

    x = jax.random.normal(kx, (N, Cin, H, W), jnp.float32)          # NCHW input

    params = {
        # conv1: 3x3, Cin -> Cout, no bias
        "w1": jax.random.normal(k1, (3, 3, Cin, Cout), jnp.float32) * 0.2,
        "g1": 1.0 + 0.1 * jax.random.normal(k2, (Cout,), jnp.float32),
        "b1": 0.1 * jax.random.normal(k3, (Cout,), jnp.float32),
        # conv2: 3x3, Cout -> Cout, no bias
        "w2": jax.random.normal(k4, (3, 3, Cout, Cout), jnp.float32) * 0.2,
        "g2": 1.0 + 0.1 * jax.random.normal(k5, (Cout,), jnp.float32),
        "b2": 0.1 * jax.random.normal(k6, (Cout,), jnp.float32),
        # identity_map: 1x1, Cin -> Cout, with bias (PyTorch default)
        "wid": jax.random.normal(k7, (Cin, Cout), jnp.float32) * 0.3,
        "bid": 0.1 * jax.random.normal(k8, (Cout,), jnp.float32),
    }

    ref = jax.block_until_ready(resblock2d_reference(x, params, stride=stride))

    # f32 MXU path: tight tolerance.
    out_f32 = jax.block_until_ready(
        resblock2d_forward(x, params, stride=stride, compute_dtype=jnp.float32))
    assert out_f32.shape == (N, Cout, H, W), out_f32.shape
    np.testing.assert_allclose(np.asarray(out_f32), np.asarray(ref),
                               rtol=2e-3, atol=2e-3)

    # bf16 MXU path (the optimized default): looser tolerance.
    out_bf16 = jax.block_until_ready(
        resblock2d_forward(x, params, stride=stride, compute_dtype=jnp.bfloat16))
    assert out_bf16.shape == (N, Cout, H, W), out_bf16.shape
    np.testing.assert_allclose(np.asarray(out_bf16), np.asarray(ref),
                               rtol=2e-2, atol=2e-2)

    print("KERNEL_OK")
</pallas_src>

<mosaic_0001>
module attributes {stable_mosaic.version = 11 : i64} {
  func.func @conv_stats_kernel(%arg0: i32, %arg1: memref<128x36xf32, #tpu.memory_space<vmem>>, %arg2: memref<36x128xf32, #tpu.memory_space<vmem>>, %arg3: memref<128x128xf32, #tpu.memory_space<vmem>>, %arg4: memref<2x128xf32, #tpu.memory_space<vmem>>) attributes {dimension_semantics = [#tpu.dimension_semantics<arbitrary>], iteration_bounds = array<i64: 4>, scalar_prefetch = 0 : i64, scratch_operands = 0 : i64, tpu.core_type = #tpu.core_type<tc>, window_params = [{transform_indices = @transform_0, window_bounds = array<i64: 128, 36>}, {pipeline_mode = #tpu.pipeline_mode<synchronous>, transform_indices = @transform_1, window_bounds = array<i64: 36, 128>}, {transform_indices = @transform_2, window_bounds = array<i64: 128, 128>}, {pipeline_mode = #tpu.pipeline_mode<synchronous>, transform_indices = @transform_3, window_bounds = array<i64: 2, 128>}]} {
    %c0 = arith.constant 0 : index
    %c0_0 = arith.constant 0 : index
    %0 = vector.load %arg1[%c0, %c0_0] : memref<128x36xf32, #tpu.memory_space<vmem>>, vector<128x36xf32>
    %c0_1 = arith.constant 0 : index
    %c0_2 = arith.constant 0 : index
    %1 = vector.load %arg2[%c0_1, %c0_2] : memref<36x128xf32, #tpu.memory_space<vmem>>, vector<36x128xf32>
    %cst = arith.constant dense<0.000000e+00> : vector<128x128xf32>
    %2 = tpu.matmul %0, %1, %cst {dimension_numbers = #tpu.dot_dimension_numbers<[1], [0], [0], [1], [0, 0, 1, 1], [], []>} : vector<128x36xf32>, vector<36x128xf32>, vector<128x128xf32> -> vector<128x128xf32>
    %c0_3 = arith.constant 0 : index
    %c0_4 = arith.constant 0 : index
    %3 = vector.load %arg3[%c0_3, %c0_4] : memref<128x128xf32, #tpu.memory_space<vmem>>, vector<128x128xf32>
    tpu.vector_store %arg3[%c0_3, %c0_4], %2 {strides = array<i32>} : memref<128x128xf32, #tpu.memory_space<vmem>>, vector<128x128xf32>,
    %c0_i32 = arith.constant 0 : i32
    %4 = arith.cmpi eq, %arg0, %c0_i32 : i32
    %5 = arith.extui %4 : i1 to i32
    %c0_i32_5 = arith.constant 0 : i32
    %6 = arith.cmpi ne, %5, %c0_i32_5 : i32
    scf.if %6 {
      %cst_12 = arith.constant 0.000000e+00 : f32
      %16 = vector.broadcast %cst_12 : f32 to vector<2x128xf32>
      %c0_13 = arith.constant 0 : index
      %c0_14 = arith.constant 0 : index
      %17 = vector.load %arg4[%c0_13, %c0_14] : memref<2x128xf32, #tpu.memory_space<vmem>>, vector<2x128xf32>
      tpu.vector_store %arg4[%c0_13, %c0_14], %16 {strides = array<i32>} : memref<2x128xf32, #tpu.memory_space<vmem>>, vector<2x128xf32>,
    } else {
    }
    %c0_6 = arith.constant 0 : index
    %c0_7 = arith.constant 0 : index
    %7 = vector.load %arg4[%c0_6, %c0_7] : memref<2x128xf32, #tpu.memory_space<vmem>>, vector<2x128xf32>
    %cst_8 = arith.constant dense<0.000000e+00> : vector<128xf32>
    %8 = vector.multi_reduction <add>, %2, %cst_8 [0] : vector<128x128xf32> to vector<128xf32>
    %9 = vector.shape_cast %8 : vector<128xf32> to vector<1x128xf32>
    %10 = arith.mulf %2, %2 : vector<128x128xf32>
    %cst_9 = arith.constant dense<0.000000e+00> : vector<128xf32>
    %11 = vector.multi_reduction <add>, %10, %cst_9 [0] : vector<128x128xf32> to vector<128xf32>
    %12 = vector.shape_cast %11 : vector<128xf32> to vector<1x128xf32>
    %13 = tpu.concatenate %9, %12 in 0 : vector<1x128xf32>, vector<1x128xf32> -> vector<2x128xf32>
    %14 = arith.addf %7, %13 : vector<2x128xf32>
    %c0_10 = arith.constant 0 : index
    %c0_11 = arith.constant 0 : index
    %15 = vector.load %arg4[%c0_10, %c0_11] : memref<2x128xf32, #tpu.memory_space<vmem>>, vector<2x128xf32>
    tpu.vector_store %arg4[%c0_10, %c0_11], %14 {strides = array<i32>} : memref<2x128xf32, #tpu.memory_space<vmem>>, vector<2x128xf32>,
    return
  }
  func.func @transform_0(%arg0: i32) -> (i32, i32) {
    %c0_i32 = arith.constant 0 : i32
    %c0_i32_0 = arith.constant 0 : i32
    return %arg0, %c0_i32 : i32, i32
  }
  func.func @transform_1(%arg0: i32) -> (i32, i32) {
    %c0_i32 = arith.constant 0 : i32
    %c0_i32_0 = arith.constant 0 : i32
    %c0_i32_1 = arith.constant 0 : i32
    return %c0_i32, %c0_i32_0 : i32, i32
  }
  func.func @transform_2(%arg0: i32) -> (i32, i32) {
    %c0_i32 = arith.constant 0 : i32
    %c0_i32_0 = arith.constant 0 : i32
    return %arg0, %c0_i32 : i32, i32
  }
  func.func @transform_3(%arg0: i32) -> (i32, i32) {
    %c0_i32 = arith.constant 0 : i32
    %c0_i32_0 = arith.constant 0 : i32
    %c0_i32_1 = arith.constant 0 : i32
    return %c0_i32, %c0_i32_0 : i32, i32
  }
}

</mosaic_0001>

<llo_original>
// kernel: tpu_custom_call.1
$region0: #{tpu_custom_call.1}
  #allocation0 [shape = 'u32[]', space=smem, size = 0x4, offset = 0x4, fixed_abs, tag = 'smem constant byte address 0x4 - core index']
  #allocation1 [shape = 'u32[144,128]{1,0:T(1,128)}', space=vmem, size = 0x12000, scoped, tag = 'internal scratch']
  %s0 = inlined_call_operand.vmem [shape: f32[512,36], index: 0, kind: input, shape index: {}]
  %s1 = inlined_call_operand.vmem [shape: f32[36,128], index: 1, kind: input, shape index: {}]
  %s2 = inlined_call_operand.hbm [shape: f32[512,128], index: 2, kind: output, shape index: {0}]
  %s3 = inlined_call_operand.hbm [shape: f32[2,128], index: 3, kind: output, shape index: {1}]
  %4 = xla_tuple %s2, %s3
  %s5 = sld [smem:[#allocation0]]
  $region53: #{tpu_custom_call.1} parent=0
    _
  %s7 = ssub.s32 1, %s5
  %s8 = scalar_select 0, %s7, %s5
  $region1: #{tpu_custom_call.1} parent=0
    #allocation2 [shape = 'u8[131072]{0}', space=vmem, size = 0x20000, scoped, tag = 'output window, operand 0']
    #allocation3 [shape = 's32[2]{0}', space=sflag, size = 0x8, scoped, tag = 'scoped memory for tpu_custom_call.1']
    #allocation4 [shape = 'u8[1024]{0}', space=vmem, size = 0x400, scoped, tag = 'output window, operand 1, single buffered']
    #allocation5 [shape = 's32[1]{0}', space=sflag, size = 0x4, scoped, tag = 'scoped memory for tpu_custom_call.1']
    %9 = vsyncpa [#allocation3], 0
    %s10 = scalar_lea.sflag [#allocation3], 1
    %11 = vsyncpa %s10, 0
    %12 = vsyncpa [#allocation5], 0
    loop: start=0, step=1, limit=6
    $region2: #{tpu_custom_call.1} parent=1 // loop_pre_header
      _
    $region3: #{tpu_custom_call.1} parent=1 // loop_header
      %s14 = sphi 0, %s18
      %p15 = scmp.ge.s32.totalorder %s14, 6
      %s24 = sphi 0, %s26
      %s27 = sphi 0, %s24
      %s28 = sphi 0, %s27
      %s44 = sphi 0, %s28
      %s48 = sphi 0, %s48
      %s50 = sphi 0, %s48
      %s51 = sphi 0, %s50
      %s65 = sphi 0, %s51
      %s71 = sphi 0, %s73
      %s74 = sphi 0, %s71
      %s75 = sphi 0, %s74
      %s91 = sphi 0, %s75
      %s95 = sphi 0, %s95
      %s97 = sphi 0, %s95
      %s98 = sphi 0, %s97
      %s112 = sphi 0, %s98
    $region4: #{tpu_custom_call.1} parent=1 // loop_header_branch
      %17 = sbr.rel (%p15) target = $region8
    $region5: #{tpu_custom_call.1} parent=1 // loop_body
      %s19 = ssub.s32 %s14, 1
      %s20 = ssub.s32 %s14, 2
      %s21 = sadd.s32 %s14, 1
      %s22 = ssub.s32 %s14, %s21
      %p23 = scmp.eq.s32.totalorder %s22, 0
      %s25 = sadd.s32 %s24, 1
      %s26 = scalar_select %p23, %s24, %s25
      %p29 = pneg %p23
      %p30 = scmp.eq.s32.totalorder %s14, 3
      %p31 = por %p29, %p30
      %p32 = scmp.ne.s32.totalorder %s24, %s27
      %p33 = scmp.eq.s32.totalorder %s14, 0
      %p34 = por %p32, %p33
      %p35 = scmp.ne.s32.totalorder %s24, %s27
      %p36 = scmp.eq.s32.totalorder %s19, 3
      %p37 = por %p35, %p36
      %p38 = scmp.ne.s32.totalorder %s27, %s28
      %p39 = scmp.eq.s32.totalorder %s19, 0
      %p40 = por %p38, %p39
      %p41 = scmp.ne.s32.totalorder %s27, %s28
      %p42 = scmp.eq.s32.totalorder %s20, 3
      %p43 = por %p41, %p42
      %p45 = scmp.ne.s32.totalorder %s28, %s44
      %p46 = scmp.eq.s32.totalorder %s20, 0
      %p47 = por %p45, %p46
      %s49 = sadd.s32 %s48, 1
      %p52 = scmp.eq.s32.totalorder %s14, 3
      %p53 = scmp.ne.s32.totalorder %s48, %s50
      %p54 = scmp.eq.s32.totalorder %s14, 0
      %p55 = por %p53, %p54
      %p56 = scmp.ne.s32.totalorder %s48, %s50
      %p57 = scmp.eq.s32.totalorder %s19, 3
      %p58 = por %p56, %p57
      %p59 = scmp.ne.s32.totalorder %s50, %s51
      %p60 = scmp.eq.s32.totalorder %s19, 0
      %p61 = por %p59, %p60
      %p62 = scmp.ne.s32.totalorder %s50, %s51
      %p63 = scmp.eq.s32.totalorder %s20, 3
      %p64 = por %p62, %p63
      %p66 = scmp.ne.s32.totalorder %s51, %s65
      %p67 = scmp.eq.s32.totalorder %s20, 0
      %p68 = por %p66, %p67
      %s69 = ssub.s32 %s14, %s21
      %p70 = scmp.eq.s32.totalorder %s69, 0
      %s72 = sadd.s32 %s71, 1
      %s73 = scalar_select %p70, %s71, %s72
      %p76 = pneg %p70
      %p77 = scmp.eq.s32.totalorder %s14, 3
      %p78 = por %p76, %p77
      %p79 = scmp.ne.s32.totalorder %s71, %s74
      %p80 = scmp.eq.s32.totalorder %s14, 0
      %p81 = por %p79, %p80
      %p82 = scmp.ne.s32.totalorder %s71, %s74
      %p83 = scmp.eq.s32.totalorder %s19, 3
      %p84 = por %p82, %p83
      %p85 = scmp.ne.s32.totalorder %s74, %s75
      %p86 = scmp.eq.s32.totalorder %s19, 0
      %p87 = por %p85, %p86
      %p88 = scmp.ne.s32.totalorder %s74, %s75
      %p89 = scmp.eq.s32.totalorder %s20, 3
      %p90 = por %p88, %p89
      %p92 = scmp.ne.s32.totalorder %s75, %s91
      %p93 = scmp.eq.s32.totalorder %s20, 0
      %p94 = por %p92, %p93
      %s96 = sadd.s32 %s95, 1
      %p99 = scmp.eq.s32.totalorder %s14, 3
      %p100 = scmp.ne.s32.totalorder %s95, %s97
      %p101 = scmp.eq.s32.totalorder %s14, 0
      %p102 = por %p100, %p101
      %p103 = scmp.ne.s32.totalorder %s95, %s97
      %p104 = scmp.eq.s32.totalorder %s19, 3
      %p105 = por %p103, %p104
      %p106 = scmp.ne.s32.totalorder %s97, %s98
      %p107 = scmp.eq.s32.totalorder %s19, 0
      %p108 = por %p106, %p107
      %p109 = scmp.ne.s32.totalorder %s97, %s98
      %p110 = scmp.eq.s32.totalorder %s20, 3
      %p111 = por %p109, %p110
      %p113 = scmp.ne.s32.totalorder %s98, %s112
      %p114 = scmp.eq.s32.totalorder %s20, 0
      %p115 = por %p113, %p114
      %p116 = scmp.le.s32.totalorder 1, %s14
      %p117 = scmp.lt.s32.totalorder %s14, 5
      %p118 = pnand %p116, %p117
      %p119 = pneg %p118
      // Predicated region
      $region9: #{tpu_custom_call.1} parent=5 // pred_check
        _
      $region10: #{tpu_custom_call.1} parent=5 // pred_check_branch
        %121 = sbr.rel (%p118) target = $region12
      $region11: #{tpu_custom_call.1} parent=5 // pred_region
        %s122 = ssub.s32 %s14, 1
        // Predicated region
        $region13: #{tpu_custom_call.1} parent=11 // pred_check
          %p123 = pneg %p61
        $region14: #{tpu_custom_call.1} parent=11 // pred_check_branch
          %125 = sbr.rel (%p123) target = $region16
        $region15: #{tpu_custom_call.1} parent=11 // pred_region
          _
        $region16: #{tpu_custom_call.1} parent=11 // pred_fallthru
          _
      $region12: #{tpu_custom_call.1} parent=5 // pred_fallthru
        _
      %p126 = scmp.lt.s32.totalorder %s14, 4
      // Predicated region
      $region17: #{tpu_custom_call.1} parent=5 // pred_check
        %p127 = pneg %p126
      $region18: #{tpu_custom_call.1} parent=5 // pred_check_branch
        %129 = sbr.rel (%p127) target = $region20
      $region19: #{tpu_custom_call.1} parent=5 // pred_region
        // Predicated region
        $region21: #{tpu_custom_call.1} parent=19 // pred_check
          %p130 = pneg %p34
        $region22: #{tpu_custom_call.1} parent=19 // pred_check_branch
          %132 = sbr.rel (%p130) target = $region24
        $region23: #{tpu_custom_call.1} parent=19 // pred_region
          %s133 = smul.u32 16, %s14
          %p134 = scmp.lt.s32.totalorder %s133, 63
          %s135 = scalar_select %p134, %s133, 63
          %s136 = smul.addr %s135, 8
          %s137 = scalar_lea.vmem %s0, %s136
          %s138 = smul.u32 16, %s14
        $region24: #{tpu_custom_call.1} parent=19 // pred_fallthru
          _
      $region20: #{tpu_custom_call.1} parent=5 // pred_fallthru
        _
      %p139 = scmp.le.s32.totalorder 1, %s14
      %p140 = scmp.lt.s32.totalorder %s14, 5
      %p141 = pnand %p139, %p140
      %p142 = pneg %p141
      // Predicated region
      $region25: #{tpu_custom_call.1} parent=5 // pred_check
        _
      $region26: #{tpu_custom_call.1} parent=5 // pred_check_branch
        %144 = sbr.rel (%p141) target = $region28
      $region27: #{tpu_custom_call.1} parent=5 // pred_region
        %s145 = ssub.s32 %s14, 1
        %s146 = smul.u32 16, %s19
        %p147 = scmp.lt.s32.totalorder %s146, 63
        %s148 = scalar_select %p147, %s146, 63
        %s149 = smul.addr %s148, 8
        %s150 = scalar_lea.vmem %s0, %s149
        %p151 = pneg %p40
        %p152 = pneg %p37
        %p153 = pneg %p61
        %p154 = pneg %p58
        %p155 = pneg %p87
        %p156 = pneg %p84
        %s157 = sand.u32 %s74, 1
        %s158 = scalar_lea.sflag [#allocation3], %s157
        %s159 = sand.u32 %s74, 1
        %s160 = smul.addr %s159, 128
        %s161 = scalar_lea.vmem [#allocation2], %s160
        %p162 = pneg %p108
        %p163 = pneg %p105
        %s164 = smul.u32 16, %s19
        %p165 = scmp.lt.s32.totalorder %s164, 63
        %s166 = scalar_select %p165, %s164, 63
        %s167 = smul.addr %s166, 8
        %s168 = scalar_lea.vmem %s0, %s167
        %s169 = smul.u32 16, %s19
        %s170 = smul.u32 16, %s19
        %v171 = vld [vmem:[%s168] sm:$0xff]
        %v172 = vld [vmem:[%s168 + $0x8] sm:$0xff]
        %v173 = vld [vmem:[%s168 + $0x10] sm:$0xff]
        %v174 = vld [vmem:[%s168 + $0x18] sm:$0xff]
        %v175 = vld [vmem:[%s168 + $0x20] sm:$0xff]
        %v176 = vld [vmem:[%s168 + $0x28] sm:$0xff]
        %v177 = vld [vmem:[%s168 + $0x30] sm:$0xff]
        %v178 = vld [vmem:[%s168 + $0x38] sm:$0xff]
        %v179 = vld [vmem:[%s168 + $0x40] sm:$0xff]
        %v180 = vld [vmem:[%s168 + $0x48] sm:$0xff]
        %v181 = vld [vmem:[%s168 + $0x50] sm:$0xff]
        %v182 = vld [vmem:[%s168 + $0x58] sm:$0xff]
        %v183 = vld [vmem:[%s168 + $0x60] sm:$0xff]
        %v184 = vld [vmem:[%s168 + $0x68] sm:$0xff]
        %v185 = vld [vmem:[%s168 + $0x70] sm:$0xff]
        %v186 = vld [vmem:[%s168 + $0x78] sm:$0xff]
        %v187 = vld [vmem:[%s1] sm:$0xff]
        %v188 = vld [vmem:[%s1 + $0x8] sm:$0xff]
        %v189 = vld [vmem:[%s1 + $0x10] sm:$0xff]
        %v190 = vld [vmem:[%s1 + $0x18] sm:$0xff]
        %v191 = vld [vmem:[%s1 + $0x20] sm:$0xf]
        %vm192 = vcmask 293888
        %v194 = vsel %vm192, %v171, 0
        %v197 = vsel %vm192, %v172, 0
        %v200 = vsel %vm192, %v173, 0
        %v203 = vsel %vm192, %v174, 0
        %v206 = vsel %vm192, %v175, 0
        %v209 = vsel %vm192, %v176, 0
        %v212 = vsel %vm192, %v177, 0
        %v215 = vsel %vm192, %v178, 0
        %v218 = vsel %vm192, %v179, 0
        %v221 = vsel %vm192, %v180, 0
        %v224 = vsel %vm192, %v181, 0
        %v227 = vsel %vm192, %v182, 0
        %v230 = vsel %vm192, %v183, 0
        %v233 = vsel %vm192, %v184, 0
        %v236 = vsel %vm192, %v185, 0
        %v239 = vsel %vm192, %v186, 0
        %vm241 = vcmask 1043456
        %v243 = vsel %vm241, %v191, 0
        %245 = vmatprep.subr.mxu0 0.0
        %246 = vmatpush1.msra.mxu0 %v187
        %247 = vmatprep.subr.mxu0 0.0
        %248 = vmatpush1.msra.mxu0 %v188
        %249 = vmatprep.subr.mxu0 0.0
        %250 = vmatpush1.msra.mxu0 %v189
        %251 = vmatprep.subr.mxu0 0.0
        %252 = vmatpush1.msra.mxu0 %v190
        %253 = vmatprep.subr.mxu0 0.0
        %254 = vmatpush1.msra.mxu0 %v243
        %255 = vmatprep.subr.mxu0 0.0
        %256 = vmatpush1.msra.mxu0 0.0
        %257 = vmatprep.subr.mxu0 0.0
        %258 = vmatpush1.msra.mxu0 0.0
        %259 = vmatprep.subr.mxu0 0.0
        %260 = vmatpush1.msra.mxu0 0.0
        %261 = vmatprep.subr.mxu0 0.0
        %262 = vmatpush1.msra.mxu0 0.0
        %263 = vmatprep.subr.mxu0 0.0
        %264 = vmatpush1.msra.mxu0 0.0
        %265 = vmatprep.subr.mxu0 0.0
        %266 = vmatpush1.msra.mxu0 0.0
        %267 = vmatprep.subr.mxu0 0.0
        %268 = vmatpush1.msra.mxu0 0.0
        %269 = vmatprep.subr.mxu0 0.0
        %270 = vmatpush1.msra.mxu0 0.0
        %271 = vmatprep.subr.mxu0 0.0
        %272 = vmatpush1.msra.mxu0 0.0
        %273 = vmatprep.subr.mxu0 0.0
        %274 = vmatpush1.msra.mxu0 0.0
        %275 = vmatprep.subr.mxu0 0.0
        %276 = vmatpush1.msra.mxu0 0.0
        %277 = vmatprep.subr.mxu0 0.0
        %278 = vmatpush1.msra.mxu0 0.0
        %279 = vmatprep.subr.mxu0 0.0
        %280 = vmatpush1.msra.mxu0 0.0
        %281 = vmatprep.subr.mxu0 0.0
        %282 = vmatpush1.msra.mxu0 0.0
        %283 = vmatprep.subr.mxu0 0.0
        %284 = vmatpush1.msra.mxu0 0.0
        %285 = vmatprep.subr.mxu0 0.0
        %286 = vmatpush1.msra.mxu0 0.0
        %287 = vmatprep.subr.mxu0 0.0
        %288 = vmatpush1.msra.mxu0 0.0
        %289 = vmatprep.subr.mxu0 0.0
        %290 = vmatpush1.msra.mxu0 0.0
        %291 = vmatprep.subr.mxu0 0.0
        %292 = vmatpush1.msra.mxu0 0.0
        %293 = vmatprep.subr.mxu0 0.0
        %294 = vmatpush1.msra.mxu0 0.0
        %295 = vmatprep.subr.mxu0 0.0
        %296 = vmatpush1.msra.mxu0 0.0
        %297 = vmatprep.subr.mxu0 0.0
        %298 = vmatpush1.msra.mxu0 0.0
        %299 = vmatprep.subr.mxu0 0.0
        %300 = vmatpush1.msra.mxu0 0.0
        %301 = vmatprep.subr.mxu0 0.0
        %302 = vmatpush1.msra.mxu0 0.0
        %303 = vmatprep.subr.mxu0 0.0
        %304 = vmatpush1.msra.mxu0 0.0
        %305 = vmatprep.subr.mxu0 0.0
        %306 = vmatpush1.msra.mxu0 0.0
        %307 = vmatprep.subr.mxu0 0.0
        %308 = vmatpush1.msra.mxu0 0.0
        %309 = vmatprep.mubr.f32.mxu0 0.0
        %310 = vmatmul.mubr.f32.gmra.mrb[0].mxu0 %v194
        %v311 = vpop.f32.mrb[0].mxu0
        %v312 = vadd.f32 0.0, %v311
        %v313 = vpop.f32.mrb[0].mxu0
        %314 = vmatprep.mubr.f32.mxu0 0.0
        %315 = vmatmul.mubr.f32.gmra.mrb[0].mxu0 %v197
        %v316 = vpop.f32.mrb[0].mxu0
        %v317 = vadd.f32 0.0, %v316
        %v318 = vpop.f32.mrb[0].mxu0
        %319 = vmatprep.mubr.f32.mxu0 0.0
        %320 = vmatmul.mubr.f32.gmra.mrb[0].mxu0 %v200
        %v321 = vpop.f32.mrb[0].mxu0
        %v322 = vadd.f32 0.0, %v321
        %v323 = vpop.f32.mrb[0].mxu0
        %324 = vmatprep.mubr.f32.mxu0 0.0
        %325 = vmatmul.mubr.f32.gmra.mrb[0].mxu0 %v203
        %v326 = vpop.f32.mrb[0].mxu0
        %v327 = vadd.f32 0.0, %v326
        %v328 = vpop.f32.mrb[0].mxu0
        %329 = vmatprep.mubr.f32.mxu0 0.0
        %330 = vmatmul.mubr.f32.gmra.mrb[0].mxu0 %v206
        %v331 = vpop.f32.mrb[0].mxu0
        %v332 = vadd.f32 0.0, %v331
        %v333 = vpop.f32.mrb[0].mxu0
        %334 = vmatprep.mubr.f32.mxu0 0.0
        %335 = vmatmul.mubr.f32.gmra.mrb[0].mxu0 %v209
        %v336 = vpop.f32.mrb[0].mxu0
        %v337 = vadd.f32 0.0, %v336
        %v338 = vpop.f32.mrb[0].mxu0
        %339 = vmatprep.mubr.f32.mxu0 0.0
        %340 = vmatmul.mubr.f32.gmra.mrb[0].mxu0 %v212
        %v341 = vpop.f32.mrb[0].mxu0
        %v342 = vadd.f32 0.0, %v341
        %v343 = vpop.f32.mrb[0].mxu0
        %344 = vmatprep.mubr.f32.mxu0 0.0
        %345 = vmatmul.mubr.f32.gmra.mrb[0].mxu0 %v215
        %v346 = vpop.f32.mrb[0].mxu0
        %v347 = vadd.f32 0.0, %v346
        %v348 = vpop.f32.mrb[0].mxu0
        %349 = vmatprep.mubr.f32.mxu0 0.0
        %350 = vmatmul.mubr.f32.gmra.mrb[0].mxu0 %v218
        %v351 = vpop.f32.mrb[0].mxu0
        %v352 = vadd.f32 0.0, %v351
        %v353 = vpop.f32.mrb[0].mxu0
        %354 = vmatprep.mubr.f32.mxu0 0.0
        %355 = vmatmul.mubr.f32.gmra.mrb[0].mxu0 %v221
        %v356 = vpop.f32.mrb[0].mxu0
        %v357 = vadd.f32 0.0, %v356
        %v358 = vpop.f32.mrb[0].mxu0
        %359 = vmatprep.mubr.f32.mxu0 0.0
        %360 = vmatmul.mubr.f32.gmra.mrb[0].mxu0 %v224
        %v361 = vpop.f32.mrb[0].mxu0
        %v362 = vadd.f32 0.0, %v361
        %v363 = vpop.f32.mrb[0].mxu0
        %364 = vmatprep.mubr.f32.mxu0 0.0
        %365 = vmatmul.mubr.f32.gmra.mrb[0].mxu0 %v227
        %v366 = vpop.f32.mrb[0].mxu0
        %v367 = vadd.f32 0.0, %v366
        %v368 = vpop.f32.mrb[0].mxu0
        %369 = vmatprep.mubr.f32.mxu0 0.0
        %370 = vmatmul.mubr.f32.gmra.mrb[0].mxu0 %v230
        %v371 = vpop.f32.mrb[0].mxu0
        %v372 = vadd.f32 0.0, %v371
        %v373 = vpop.f32.mrb[0].mxu0
        %374 = vmatprep.mubr.f32.mxu0 0.0
        %375 = vmatmul.mubr.f32.gmra.mrb[0].mxu0 %v233
        %v376 = vpop.f32.mrb[0].mxu0
        %v377 = vadd.f32 0.0, %v376
        %v378 = vpop.f32.mrb[0].mxu0
        %379 = vmatprep.mubr.f32.mxu0 0.0
        %380 = vmatmul.mubr.f32.gmra.mrb[0].mxu0 %v236
        %v381 = vpop.f32.mrb[0].mxu0
        %v382 = vadd.f32 0.0, %v381
        %v383 = vpop.f32.mrb[0].mxu0
        %384 = vmatprep.mubr.f32.mxu0 0.0
        %385 = vmatmul.mubr.f32.gmra.mrb[0].mxu0 %v239
        %v386 = vpop.f32.mrb[0].mxu0
        %v387 = vadd.f32 0.0, %v386
        %v388 = vpop.f32.mrb[0].mxu0
        %389 = vdwg.mxu0
        %390 = vst [vmem:[%s161] sm:$0xff] %v312
        %391 = vst [vmem:[%s161 + $0x8] sm:$0xff] %v317
        %392 = vst [vmem:[%s161 + $0x10] sm:$0xff] %v322
        %393 = vst [vmem:[%s161 + $0x18] sm:$0xff] %v327
        %394 = vst [vmem:[%s161 + $0x20] sm:$0xff] %v332
        %395 = vst [vmem:[%s161 + $0x28] sm:$0xff] %v337
        %396 = vst [vmem:[%s161 + $0x30] sm:$0xff] %v342
        %397 = vst [vmem:[%s161 + $0x38] sm:$0xff] %v347
        %398 = vst [vmem:[%s161 + $0x40] sm:$0xff] %v352
        %399 = vst [vmem:[%s161 + $0x48] sm:$0xff] %v357
        %400 = vst [vmem:[%s161 + $0x50] sm:$0xff] %v362
        %401 = vst [vmem:[%s161 + $0x58] sm:$0xff] %v367
        %402 = vst [vmem:[%s161 + $0x60] sm:$0xff] %v372
        %403 = vst [vmem:[%s161 + $0x68] sm:$0xff] %v377
        %404 = vst [vmem:[%s161 + $0x70] sm:$0xff] %v382
        %405 = vst [vmem:[%s161 + $0x78] sm:$0xff] %v387
        %p406 = scmp.eq.s32.totalorder %s19, 0
        // Predicated region
        $region29: #{tpu_custom_call.1} parent=27 // pred_check
          %p407 = pneg %p406
        $region30: #{tpu_custom_call.1} parent=27 // pred_check_branch
          %409 = sbr.rel (%p407) target = $region32
        $region31: #{tpu_custom_call.1} parent=27 // pred_region
          %410 = vst [vmem:[#allocation4] sm:$0x3] 0.0
        $region32: #{tpu_custom_call.1} parent=27 // pred_fallthru
          _
        %v411 = vld [vmem:[#allocation4] sm:$0x3]
        %v412 = vadd.f32 %v312, %v317
        %v413 = vadd.f32 %v412, %v322
        %v414 = vadd.f32 %v413, %v327
        %v415 = vadd.f32 %v414, %v332
        %v416 = vadd.f32 %v415, %v337
        %v417 = vadd.f32 %v416, %v342
        %v418 = vadd.f32 %v417, %v347
        %v419 = vadd.f32 %v418, %v352
        %v420 = vadd.f32 %v419, %v357
        %v421 = vadd.f32 %v420, %v362
        %v422 = vadd.f32 %v421, %v367
        %v423 = vadd.f32 %v422, %v372
        %v424 = vadd.f32 %v423, %v377
        %v425 = vadd.f32 %v424, %v382
        %v426 = vadd.f32 %v425, %v387
        %v427 = vrot.slane %v426, 4
        %v428 = vadd.f32 %v426, %v427
        %v429 = vrot.slane %v428, 2
        %v430 = vadd.f32 %v428, %v429
        %v431 = vrot.slane %v430, 1
        %v432 = vadd.f32 %v430, %v431
        %v433 = vmul.f32 %v312, %v312
        %v434 = vmul.f32 %v317, %v317
        %v435 = vmul.f32 %v322, %v322
        %v436 = vmul.f32 %v327, %v327
        %v437 = vmul.f32 %v332, %v332
        %v438 = vmul.f32 %v337, %v337
        %v439 = vmul.f32 %v342, %v342
        %v440 = vmul.f32 %v347, %v347
        %v441 = vmul.f32 %v352, %v352
        %v442 = vmul.f32 %v357, %v357
        %v443 = vmul.f32 %v362, %v362
        %v444 = vmul.f32 %v367, %v367
        %v445 = vmul.f32 %v372, %v372
        %v446 = vmul.f32 %v377, %v377
        %v447 = vmul.f32 %v382, %v382
        %v448 = vmul.f32 %v387, %v387
        %v449 = vadd.f32 %v433, %v434
        %v450 = vadd.f32 %v449, %v435
        %v451 = vadd.f32 %v450, %v436
        %v452 = vadd.f32 %v451, %v437
        %v453 = vadd.f32 %v452, %v438
        %v454 = vadd.f32 %v453, %v439
        %v455 = vadd.f32 %v454, %v440
        %v456 = vadd.f32 %v455, %v441
        %v457 = vadd.f32 %v456, %v442
        %v458 = vadd.f32 %v457, %v443
        %v459 = vadd.f32 %v458, %v444
        %v460 = vadd.f32 %v459, %v445
        %v461 = vadd.f32 %v460, %v446
        %v462 = vadd.f32 %v461, %v447
        %v463 = vadd.f32 %v462, %v448
        %v464 = vrot.slane %v463, 4
        %v465 = vadd.f32 %v463, %v464
        %v466 = vrot.slane %v465, 2
        %v467 = vadd.f32 %v465, %v466
        %v468 = vrot.slane %v467, 1
        %v469 = vadd.f32 %v467, %v468
        %vm470 = vcmask 1040384
        %v471 = vsel %vm470, %v432, %v469
        %v472 = vadd.f32 %v411, %v471
        %473 = vst [vmem:[#allocation4] sm:$0x3] %v472
        %s474 = sand.u32 %s74, 1
        %s475 = scalar_lea.sflag [#allocation3], %s474
        %s476 = sand.u32 %s74, 1
        %s477 = smul.addr %s476, 128
        %s478 = scalar_lea.vmem [#allocation2], %s477
        // Predicated region
        $region33: #{tpu_custom_call.1} parent=27 // pred_check
          %p479 = pneg %p84
        $region34: #{tpu_custom_call.1} parent=27 // pred_check_branch
          %481 = sbr.rel (%p479) target = $region36
        $region35: #{tpu_custom_call.1} parent=27 // pred_region
          %s482 = smul.u32 16, %s19
          %s484 = ssub.s32 2048, 2048
          %485 = vsyncadd %s475, %s484
          %s486 = smul.addr %s482, 128
          %s487 = scalar_lea.hbm %s2, %s486
          %s488 = sshll.u32 %s478, 4
          %s489 = int_to_ptr.vmem [resolvable:$true] %s488
          %494 = dma.vmem_to_hbm [thread:$0]  %s489, 2048, %s487, %s475, 128, 128, 8
        $region36: #{tpu_custom_call.1} parent=27 // pred_fallthru
          _
        // Predicated region
        $region37: #{tpu_custom_call.1} parent=27 // pred_check
          %p495 = pneg %p105
        $region38: #{tpu_custom_call.1} parent=27 // pred_check_branch
          %497 = sbr.rel (%p495) target = $region40
        $region39: #{tpu_custom_call.1} parent=27 // pred_region
          %s499 = ssub.s32 32, 32
          %500 = vsyncadd [#allocation5], %s499
          %s502 = sshll.u32 [#allocation4], 4
          %s503 = int_to_ptr.vmem [resolvable:$true] %s502
          %505 = dma.vmem_to_hbm [thread:$0]  %s503, 32, %s3, [#allocation5]
        $region40: #{tpu_custom_call.1} parent=27 // pred_fallthru
          _
        // Predicated region
        $region41: #{tpu_custom_call.1} parent=27 // pred_check
          %p506 = pneg %p105
        $region42: #{tpu_custom_call.1} parent=27 // pred_check_branch
          %508 = sbr.rel (%p506) target = $region44
        $region43: #{tpu_custom_call.1} parent=27 // pred_region
          %509 = dma.done [#allocation5], 32
        $region44: #{tpu_custom_call.1} parent=27 // pred_fallthru
          _
      $region28: #{tpu_custom_call.1} parent=5 // pred_fallthru
        _
      %p510 = scmp.le.s32.totalorder 2, %s14
      // Predicated region
      $region45: #{tpu_custom_call.1} parent=5 // pred_check
        %p511 = pneg %p510
      $region46: #{tpu_custom_call.1} parent=5 // pred_check_branch
        %513 = sbr.rel (%p511) target = $region48
      $region47: #{tpu_custom_call.1} parent=5 // pred_region
        %s514 = ssub.s32 %s14, 2
        // Predicated region
        $region49: #{tpu_custom_call.1} parent=47 // pred_check
          %p515 = pneg %p90
        $region50: #{tpu_custom_call.1} parent=47 // pred_check_branch
          %517 = sbr.rel (%p515) target = $region52
        $region51: #{tpu_custom_call.1} parent=47 // pred_region
          %s518 = sand.u32 %s75, 1
          %s519 = scalar_lea.sflag [#allocation3], %s518
          %s520 = sand.u32 %s75, 1
          %s521 = smul.addr %s520, 128
          %s522 = scalar_lea.vmem [#allocation2], %s521
          %523 = dma.done %s519, 2048
        $region52: #{tpu_custom_call.1} parent=47 // pred_fallthru
          _
      $region48: #{tpu_custom_call.1} parent=5 // pred_fallthru
        _
    $region6: #{tpu_custom_call.1} parent=1 // loop_footer
      %s18 = sadd.s32 1, %s14
    $region7: #{tpu_custom_call.1} parent=1 // loop_footer_branch
      %13 = sbr.rel target = $region3
    $region8: #{tpu_custom_call.1} parent=1 // loop_exit
      _
    %524 = vsyncpa [#allocation3], 1
    %s525 = scalar_lea.sflag [#allocation3], 1
    %526 = vsyncpa %s525, 1
    %527 = vsyncpa [#allocation5], 1

</llo_original>
